<compile_context>
chip_gen: v6e
topology: v6e:2x2x1
jax: 0.10.0
libtpu: 0.0.40
codegen_flags: <defaults>
</compile_context>

<pallas_src>
import jax
import jax.numpy as jnp
from jax.experimental import pallas as pl
from jax.experimental.pallas import tpu as pltpu


# ----------------------------------------------------------------------------
# Fused Pallas kernel: rgb branch + flow branch + ensemble average + patch mean
# ----------------------------------------------------------------------------
def _ensemble_i3d_kernel(rgb_x_ref, flow_x_ref,
                         rgb_w1t_ref, rgb_b1_ref, rgb_w2t_ref, rgb_b2_ref,
                         flow_w1t_ref, flow_b1_ref, flow_w2t_ref, flow_b2_ref,
                         pred_ref, patch_ref):
    """Fused rgb + flow I3D_SPP-style heads and 0.5/0.5 ensemble.

    rgb_x / flow_x : [B, C, P]   (P = T*H*W on the lane axis)
    w1t            : [F, C]      (stem weights, pre-transposed)
    b1             : [F, 1]
    w2t            : [K, F]      (classifier weights, pre-transposed)
    b2             : [K, 1]
    pred           : [B, K]      (ensembled, mean over patches)
    patch          : [B, K, P]   (ensembled per-patch scores, lane-dense)
    """
    B, K, P = patch_ref.shape

    # Load the (tiny) parameters once.
    rgb_w1t, rgb_b1 = rgb_w1t_ref[...], rgb_b1_ref[...]
    rgb_w2t, rgb_b2 = rgb_w2t_ref[...].astype(jnp.bfloat16), rgb_b2_ref[...]
    flow_w1t, flow_b1 = flow_w1t_ref[...], flow_b1_ref[...]
    flow_w2t, flow_b2 = flow_w2t_ref[...].astype(jnp.bfloat16), flow_b2_ref[...]

    def branch_logits(x_b, w1t, b1, w2t_bf16, b2):
        # x_b: [C, P] -> per-patch logits [K, P].
        fdim, cdim = w1t.shape
        # 1x1x1 conv stem on the VPU: the contraction is only 2-3 wide, so
        # broadcast FMAs beat an MXU pass. Kept f32 (v5e VPU has no bf16).
        feat = jnp.broadcast_to(b1, (fdim, P)).astype(jnp.float32)
        for c in range(cdim):                      # static unroll, C in {2, 3}
            feat = feat + w1t[:, c:c + 1] * x_b[c:c + 1, :]   # [F,1]*[1,P]
        feat = jnp.maximum(feat, 0.0)
        # Per-patch classifier on the MXU: bf16 operands, f32 accumulation.
        logits = jnp.dot(w2t_bf16, feat.astype(jnp.bfloat16),
                         preferred_element_type=jnp.float32)  # [K, P]
        return logits + b2                                     # [K,1] broadcast

    for b in range(B):                             # static unroll, B = 2
        x_rgb = rgb_x_ref[b].astype(jnp.float32)       # [C_rgb, P]
        x_flow = flow_x_ref[b].astype(jnp.float32)     # [C_flow, P]
        r = branch_logits(x_rgb, rgb_w1t, rgb_b1, rgb_w2t, rgb_b2)
        f = branch_logits(x_flow, flow_w1t, flow_b1, flow_w2t, flow_b2)
        patch_ref[b] = r * 0.5 + f * 0.5               # ensemble average [K, P]

    # Clip prediction = mean over patches of the ensembled scores (linear, so
    # identical to averaging the per-branch means). Lane-axis reduce (XLU).
    pred_ref[...] = jnp.sum(patch_ref[...], axis=-1) * (1.0 / P)


# ----------------------------------------------------------------------------
# Wrapper (mirrors Ensemble_I3D.forward)
# ----------------------------------------------------------------------------
def ensemble_i3d_forward(rgb_batch, flow_batch, rgb_params, flow_params):
    """rgb_batch: [B, C_rgb, T, H, W], flow_batch: [B, C_flow, T, H, W].

    Returns (pred [B, K], patch_score [B, P, K], rgb_loss_dict, flow_loss_dict).
    """
    B, c_rgb, T, H, W = rgb_batch.shape
    c_flow = flow_batch.shape[1]
    P = T * H * W
    K = rgb_params['w2t'].shape[0]

    # Pure reshapes (THW is contiguous in NCTHW) — no host transpose; P lands
    # on the 128-lane axis inside the kernel.
    rgb_x = rgb_batch.reshape(B, c_rgb, P)
    flow_x = flow_batch.reshape(B, c_flow, P)

    pred, patch_kp = pl.pallas_call(
        _ensemble_i3d_kernel,
        out_shape=(
            jax.ShapeDtypeStruct((B, K), jnp.float32),
            jax.ShapeDtypeStruct((B, K, P), jnp.float32),
        ),
        in_specs=[pl.BlockSpec(memory_space=pltpu.MemorySpace.VMEM)] * 10,
        out_specs=(
            pl.BlockSpec(memory_space=pltpu.MemorySpace.VMEM),
            pl.BlockSpec(memory_space=pltpu.MemorySpace.VMEM),
        ),
        compiler_params=pltpu.CompilerParams(vmem_limit_bytes=32 * 1024 * 1024),
    )(rgb_x, flow_x,
      rgb_params['w1t'], rgb_params['b1'], rgb_params['w2t'], rgb_params['b2'],
      flow_params['w1t'], flow_params['b1'], flow_params['w2t'], flow_params['b2'])

    # Conventional [B, P, K] layout for consumers (cheap XLA transpose outside
    # the kernel keeps the in-kernel stores lane-dense).
    patch_score = jnp.transpose(patch_kp, (0, 2, 1))

    # TODO(synk): I3D_SPP's auxiliary loss dicts depend on unavailable
    # internals (pretrained checkpoints / SPP aux heads); returned empty.
    rgb_loss_dict, flow_loss_dict = {}, {}
    return pred, patch_score, rgb_loss_dict, flow_loss_dict


# ----------------------------------------------------------------------------
# Deterministic parameter init (synthetic stand-in for checkpoint weights),
# stored pre-transposed in the kernel-friendly layout.
# ----------------------------------------------------------------------------
def init_branch_params(key, cin, hidden, num_classes):
    k1, k2, k3, k4 = jax.random.split(key, 4)
    return {
        'w1t': 0.1 * jax.random.normal(k1, (hidden, cin), jnp.float32),   # [F, C]
        'b1': 0.01 * jax.random.normal(k2, (hidden, 1), jnp.float32),     # [F, 1]
        'w2t': 0.1 * jax.random.normal(k3, (num_classes, hidden), jnp.float32),  # [K, F]
        'b2': 0.01 * jax.random.normal(k4, (num_classes, 1), jnp.float32),        # [K, 1]
    }


if __name__ == "__main__":
    B, T, H, W = 2, 4, 8, 8
    C_RGB, C_FLOW = 3, 2          # rgb / flow modalities
    HIDDEN, NUM_CLASSES = 32, 10

    key = jax.random.PRNGKey(0)
    k_rgb_x, k_flow_x, k_rgb_p, k_flow_p = jax.random.split(key, 4)

    rgb_batch = jax.random.normal(k_rgb_x, (B, C_RGB, T, H, W), jnp.float32)
    flow_batch = jax.random.normal(k_flow_x, (B, C_FLOW, T, H, W), jnp.float32)

    rgb_params = init_branch_params(k_rgb_p, C_RGB, HIDDEN, NUM_CLASSES)
    flow_params = init_branch_params(k_flow_p, C_FLOW, HIDDEN, NUM_CLASSES)

    pred, patch_score, rgb_ld, flow_ld = ensemble_i3d_forward(
        rgb_batch, flow_batch, rgb_params, flow_params)
    pred = jax.block_until_ready(pred)
    patch_score = jax.block_until_ready(patch_score)

    P = T * H * W
    assert pred.shape == (B, NUM_CLASSES)
    assert patch_score.shape == (B, P, NUM_CLASSES)
    assert bool(jnp.all(jnp.isfinite(pred))) and bool(jnp.all(jnp.isfinite(patch_score)))

    print("KERNEL_OK")
</pallas_src>

<mosaic_0001>
module attributes {stable_mosaic.version = 11 : i64} {
  func.func @_ensemble_i3d_kernel(%arg0: memref<2x3x256xf32, #tpu.memory_space<vmem>>, %arg1: memref<2x2x256xf32, #tpu.memory_space<vmem>>, %arg2: memref<32x3xf32, #tpu.memory_space<vmem>>, %arg3: memref<32x1xf32, #tpu.memory_space<vmem>>, %arg4: memref<10x32xf32, #tpu.memory_space<vmem>>, %arg5: memref<10x1xf32, #tpu.memory_space<vmem>>, %arg6: memref<32x2xf32, #tpu.memory_space<vmem>>, %arg7: memref<32x1xf32, #tpu.memory_space<vmem>>, %arg8: memref<10x32xf32, #tpu.memory_space<vmem>>, %arg9: memref<10x1xf32, #tpu.memory_space<vmem>>, %arg10: memref<2x10xf32, #tpu.memory_space<vmem>>, %arg11: memref<2x10x256xf32, #tpu.memory_space<vmem>>) attributes {dimension_semantics = [], scalar_prefetch = 0 : i64, scratch_operands = 0 : i64, tpu.core_type = #tpu.core_type<tc>} {
    %c0 = arith.constant 0 : index
    %c0_0 = arith.constant 0 : index
    %0 = vector.load %arg2[%c0, %c0_0] : memref<32x3xf32, #tpu.memory_space<vmem>>, vector<32x3xf32>
    %c0_1 = arith.constant 0 : index
    %c0_2 = arith.constant 0 : index
    %1 = vector.load %arg3[%c0_1, %c0_2] : memref<32x1xf32, #tpu.memory_space<vmem>>, vector<32x1xf32>
    %c0_3 = arith.constant 0 : index
    %c0_4 = arith.constant 0 : index
    %2 = vector.load %arg4[%c0_3, %c0_4] : memref<10x32xf32, #tpu.memory_space<vmem>>, vector<10x32xf32>
    %3 = arith.truncf %2 : vector<10x32xf32> to vector<10x32xbf16>
    %c0_5 = arith.constant 0 : index
    %c0_6 = arith.constant 0 : index
    %4 = vector.load %arg5[%c0_5, %c0_6] : memref<10x1xf32, #tpu.memory_space<vmem>>, vector<10x1xf32>
    %c0_7 = arith.constant 0 : index
    %c0_8 = arith.constant 0 : index
    %5 = vector.load %arg6[%c0_7, %c0_8] : memref<32x2xf32, #tpu.memory_space<vmem>>, vector<32x2xf32>
    %c0_9 = arith.constant 0 : index
    %c0_10 = arith.constant 0 : index
    %6 = vector.load %arg7[%c0_9, %c0_10] : memref<32x1xf32, #tpu.memory_space<vmem>>, vector<32x1xf32>
    %c0_11 = arith.constant 0 : index
    %c0_12 = arith.constant 0 : index
    %7 = vector.load %arg8[%c0_11, %c0_12] : memref<10x32xf32, #tpu.memory_space<vmem>>, vector<10x32xf32>
    %8 = arith.truncf %7 : vector<10x32xf32> to vector<10x32xbf16>
    %c0_13 = arith.constant 0 : index
    %c0_14 = arith.constant 0 : index
    %9 = vector.load %arg9[%c0_13, %c0_14] : memref<10x1xf32, #tpu.memory_space<vmem>>, vector<10x1xf32>
    %c0_15 = arith.constant 0 : index
    %c0_16 = arith.constant 0 : index
    %c0_17 = arith.constant 0 : index
    %10 = vector.load %arg0[%c0_15, %c0_16, %c0_17] : memref<2x3x256xf32, #tpu.memory_space<vmem>>, vector<1x3x256xf32>
    %11 = vector.shape_cast %10 : vector<1x3x256xf32> to vector<3x256xf32>
    %c0_18 = arith.constant 0 : index
    %c0_19 = arith.constant 0 : index
    %c0_20 = arith.constant 0 : index
    %12 = vector.load %arg1[%c0_18, %c0_19, %c0_20] : memref<2x2x256xf32, #tpu.memory_space<vmem>>, vector<1x2x256xf32>
    %13 = vector.shape_cast %12 : vector<1x2x256xf32> to vector<2x256xf32>
    %14 = vector.shape_cast %1 : vector<32x1xf32> to vector<32x1xf32>
    %15 = vector.broadcast %14 : vector<32x1xf32> to vector<32x256xf32>
    %16 = vector.extract_strided_slice %0 {offsets = [0, 0], sizes = [32, 1], strides = [1, 1]} : vector<32x3xf32> to vector<32x1xf32>
    %17 = vector.extract_strided_slice %11 {offsets = [0, 0], sizes = [1, 256], strides = [1, 1]} : vector<3x256xf32> to vector<1x256xf32>
    %18 = vector.broadcast %16 : vector<32x1xf32> to vector<32x256xf32>
    %19 = vector.broadcast %17 : vector<1x256xf32> to vector<32x256xf32>
    %20 = arith.mulf %18, %19 : vector<32x256xf32>
    %21 = arith.addf %15, %20 : vector<32x256xf32>
    %22 = vector.extract_strided_slice %0 {offsets = [0, 1], sizes = [32, 1], strides = [1, 1]} : vector<32x3xf32> to vector<32x1xf32>
    %23 = vector.extract_strided_slice %11 {offsets = [1, 0], sizes = [1, 256], strides = [1, 1]} : vector<3x256xf32> to vector<1x256xf32>
    %24 = vector.broadcast %22 : vector<32x1xf32> to vector<32x256xf32>
    %25 = vector.broadcast %23 : vector<1x256xf32> to vector<32x256xf32>
    %26 = arith.mulf %24, %25 : vector<32x256xf32>
    %27 = arith.addf %21, %26 : vector<32x256xf32>
    %28 = vector.extract_strided_slice %0 {offsets = [0, 2], sizes = [32, 1], strides = [1, 1]} : vector<32x3xf32> to vector<32x1xf32>
    %29 = vector.extract_strided_slice %11 {offsets = [2, 0], sizes = [1, 256], strides = [1, 1]} : vector<3x256xf32> to vector<1x256xf32>
    %30 = vector.broadcast %28 : vector<32x1xf32> to vector<32x256xf32>
    %31 = vector.broadcast %29 : vector<1x256xf32> to vector<32x256xf32>
    %32 = arith.mulf %30, %31 : vector<32x256xf32>
    %33 = arith.addf %27, %32 : vector<32x256xf32>
    %cst = arith.constant 0.000000e+00 : f32
    %34 = vector.broadcast %cst : f32 to vector<32x256xf32>
    %35 = arith.maximumf %33, %34 : vector<32x256xf32>
    %36 = arith.truncf %35 : vector<32x256xf32> to vector<32x256xbf16>
    %cst_21 = arith.constant dense<0.000000e+00> : vector<10x256xf32>
    %37 = tpu.matmul %3, %36, %cst_21 {dimension_numbers = #tpu.dot_dimension_numbers<[1], [0], [0], [1], [0, 0, 1, 1], [], []>} : vector<10x32xbf16>, vector<32x256xbf16>, vector<10x256xf32> -> vector<10x256xf32>
    %38 = vector.broadcast %4 : vector<10x1xf32> to vector<10x256xf32>
    %39 = arith.addf %37, %38 : vector<10x256xf32>
    %40 = vector.shape_cast %6 : vector<32x1xf32> to vector<32x1xf32>
    %41 = vector.broadcast %40 : vector<32x1xf32> to vector<32x256xf32>
    %42 = vector.extract_strided_slice %5 {offsets = [0, 0], sizes = [32, 1], strides = [1, 1]} : vector<32x2xf32> to vector<32x1xf32>
    %43 = vector.extract_strided_slice %13 {offsets = [0, 0], sizes = [1, 256], strides = [1, 1]} : vector<2x256xf32> to vector<1x256xf32>
    %44 = vector.broadcast %42 : vector<32x1xf32> to vector<32x256xf32>
    %45 = vector.broadcast %43 : vector<1x256xf32> to vector<32x256xf32>
    %46 = arith.mulf %44, %45 : vector<32x256xf32>
    %47 = arith.addf %41, %46 : vector<32x256xf32>
    %48 = vector.extract_strided_slice %5 {offsets = [0, 1], sizes = [32, 1], strides = [1, 1]} : vector<32x2xf32> to vector<32x1xf32>
    %49 = vector.extract_strided_slice %13 {offsets = [1, 0], sizes = [1, 256], strides = [1, 1]} : vector<2x256xf32> to vector<1x256xf32>
    %50 = vector.broadcast %48 : vector<32x1xf32> to vector<32x256xf32>
    %51 = vector.broadcast %49 : vector<1x256xf32> to vector<32x256xf32>
    %52 = arith.mulf %50, %51 : vector<32x256xf32>
    %53 = arith.addf %47, %52 : vector<32x256xf32>
    %cst_22 = arith.constant 0.000000e+00 : f32
    %54 = vector.broadcast %cst_22 : f32 to vector<32x256xf32>
    %55 = arith.maximumf %53, %54 : vector<32x256xf32>
    %56 = arith.truncf %55 : vector<32x256xf32> to vector<32x256xbf16>
    %cst_23 = arith.constant dense<0.000000e+00> : vector<10x256xf32>
    %57 = tpu.matmul %8, %56, %cst_23 {dimension_numbers = #tpu.dot_dimension_numbers<[1], [0], [0], [1], [0, 0, 1, 1], [], []>} : vector<10x32xbf16>, vector<32x256xbf16>, vector<10x256xf32> -> vector<10x256xf32>
    %58 = vector.broadcast %9 : vector<10x1xf32> to vector<10x256xf32>
    %59 = arith.addf %57, %58 : vector<10x256xf32>
    %cst_24 = arith.constant 5.000000e-01 : f32
    %60 = vector.broadcast %cst_24 : f32 to vector<10x256xf32>
    %61 = arith.mulf %39, %60 : vector<10x256xf32>
    %cst_25 = arith.constant 5.000000e-01 : f32
    %62 = vector.broadcast %cst_25 : f32 to vector<10x256xf32>
    %63 = arith.mulf %59, %62 : vector<10x256xf32>
    %64 = arith.addf %61, %63 : vector<10x256xf32>
    %c0_26 = arith.constant 0 : index
    %c0_27 = arith.constant 0 : index
    %c0_28 = arith.constant 0 : index
    %65 = vector.load %arg11[%c0_26, %c0_27, %c0_28] : memref<2x10x256xf32, #tpu.memory_space<vmem>>, vector<1x10x256xf32>
    %66 = vector.shape_cast %65 : vector<1x10x256xf32> to vector<10x256xf32>
    %67 = vector.shape_cast %64 : vector<10x256xf32> to vector<1x10x256xf32>
    tpu.vector_store %arg11[%c0_26, %c0_27, %c0_28], %67 {strides = array<i32>} : memref<2x10x256xf32, #tpu.memory_space<vmem>>, vector<1x10x256xf32>,
    %c1 = arith.constant 1 : index
    %c0_29 = arith.constant 0 : index
    %c0_30 = arith.constant 0 : index
    %68 = vector.load %arg0[%c1, %c0_29, %c0_30] : memref<2x3x256xf32, #tpu.memory_space<vmem>>, vector<1x3x256xf32>
    %69 = vector.shape_cast %68 : vector<1x3x256xf32> to vector<3x256xf32>
    %c1_31 = arith.constant 1 : index
    %c0_32 = arith.constant 0 : index
    %c0_33 = arith.constant 0 : index
    %70 = vector.load %arg1[%c1_31, %c0_32, %c0_33] : memref<2x2x256xf32, #tpu.memory_space<vmem>>, vector<1x2x256xf32>
    %71 = vector.shape_cast %70 : vector<1x2x256xf32> to vector<2x256xf32>
    %72 = vector.shape_cast %1 : vector<32x1xf32> to vector<32x1xf32>
    %73 = vector.broadcast %72 : vector<32x1xf32> to vector<32x256xf32>
    %74 = vector.extract_strided_slice %0 {offsets = [0, 0], sizes = [32, 1], strides = [1, 1]} : vector<32x3xf32> to vector<32x1xf32>
    %75 = vector.extract_strided_slice %69 {offsets = [0, 0], sizes = [1, 256], strides = [1, 1]} : vector<3x256xf32> to vector<1x256xf32>
    %76 = vector.broadcast %74 : vector<32x1xf32> to vector<32x256xf32>
    %77 = vector.broadcast %75 : vector<1x256xf32> to vector<32x256xf32>
    %78 = arith.mulf %76, %77 : vector<32x256xf32>
    %79 = arith.addf %73, %78 : vector<32x256xf32>
    %80 = vector.extract_strided_slice %0 {offsets = [0, 1], sizes = [32, 1], strides = [1, 1]} : vector<32x3xf32> to vector<32x1xf32>
    %81 = vector.extract_strided_slice %69 {offsets = [1, 0], sizes = [1, 256], strides = [1, 1]} : vector<3x256xf32> to vector<1x256xf32>
    %82 = vector.broadcast %80 : vector<32x1xf32> to vector<32x256xf32>
    %83 = vector.broadcast %81 : vector<1x256xf32> to vector<32x256xf32>
    %84 = arith.mulf %82, %83 : vector<32x256xf32>
    %85 = arith.addf %79, %84 : vector<32x256xf32>
    %86 = vector.extract_strided_slice %0 {offsets = [0, 2], sizes = [32, 1], strides = [1, 1]} : vector<32x3xf32> to vector<32x1xf32>
    %87 = vector.extract_strided_slice %69 {offsets = [2, 0], sizes = [1, 256], strides = [1, 1]} : vector<3x256xf32> to vector<1x256xf32>
    %88 = vector.broadcast %86 : vector<32x1xf32> to vector<32x256xf32>
    %89 = vector.broadcast %87 : vector<1x256xf32> to vector<32x256xf32>
    %90 = arith.mulf %88, %89 : vector<32x256xf32>
    %91 = arith.addf %85, %90 : vector<32x256xf32>
    %cst_34 = arith.constant 0.000000e+00 : f32
    %92 = vector.broadcast %cst_34 : f32 to vector<32x256xf32>
    %93 = arith.maximumf %91, %92 : vector<32x256xf32>
    %94 = arith.truncf %93 : vector<32x256xf32> to vector<32x256xbf16>
    %cst_35 = arith.constant dense<0.000000e+00> : vector<10x256xf32>
    %95 = tpu.matmul %3, %94, %cst_35 {dimension_numbers = #tpu.dot_dimension_numbers<[1], [0], [0], [1], [0, 0, 1, 1], [], []>} : vector<10x32xbf16>, vector<32x256xbf16>, vector<10x256xf32> -> vector<10x256xf32>
    %96 = vector.broadcast %4 : vector<10x1xf32> to vector<10x256xf32>
    %97 = arith.addf %95, %96 : vector<10x256xf32>
    %98 = vector.shape_cast %6 : vector<32x1xf32> to vector<32x1xf32>
    %99 = vector.broadcast %98 : vector<32x1xf32> to vector<32x256xf32>
    %100 = vector.extract_strided_slice %5 {offsets = [0, 0], sizes = [32, 1], strides = [1, 1]} : vector<32x2xf32> to vector<32x1xf32>
    %101 = vector.extract_strided_slice %71 {offsets = [0, 0], sizes = [1, 256], strides = [1, 1]} : vector<2x256xf32> to vector<1x256xf32>
    %102 = vector.broadcast %100 : vector<32x1xf32> to vector<32x256xf32>
    %103 = vector.broadcast %101 : vector<1x256xf32> to vector<32x256xf32>
    %104 = arith.mulf %102, %103 : vector<32x256xf32>
    %105 = arith.addf %99, %104 : vector<32x256xf32>
    %106 = vector.extract_strided_slice %5 {offsets = [0, 1], sizes = [32, 1], strides = [1, 1]} : vector<32x2xf32> to vector<32x1xf32>
    %107 = vector.extract_strided_slice %71 {offsets = [1, 0], sizes = [1, 256], strides = [1, 1]} : vector<2x256xf32> to vector<1x256xf32>
    %108 = vector.broadcast %106 : vector<32x1xf32> to vector<32x256xf32>
    %109 = vector.broadcast %107 : vector<1x256xf32> to vector<32x256xf32>
    %110 = arith.mulf %108, %109 : vector<32x256xf32>
    %111 = arith.addf %105, %110 : vector<32x256xf32>
    %cst_36 = arith.constant 0.000000e+00 : f32
    %112 = vector.broadcast %cst_36 : f32 to vector<32x256xf32>
    %113 = arith.maximumf %111, %112 : vector<32x256xf32>
    %114 = arith.truncf %113 : vector<32x256xf32> to vector<32x256xbf16>
    %cst_37 = arith.constant dense<0.000000e+00> : vector<10x256xf32>
    %115 = tpu.matmul %8, %114, %cst_37 {dimension_numbers = #tpu.dot_dimension_numbers<[1], [0], [0], [1], [0, 0, 1, 1], [], []>} : vector<10x32xbf16>, vector<32x256xbf16>, vector<10x256xf32> -> vector<10x256xf32>
    %116 = vector.broadcast %9 : vector<10x1xf32> to vector<10x256xf32>
    %117 = arith.addf %115, %116 : vector<10x256xf32>
    %cst_38 = arith.constant 5.000000e-01 : f32
    %118 = vector.broadcast %cst_38 : f32 to vector<10x256xf32>
    %119 = arith.mulf %97, %118 : vector<10x256xf32>
    %cst_39 = arith.constant 5.000000e-01 : f32
    %120 = vector.broadcast %cst_39 : f32 to vector<10x256xf32>
    %121 = arith.mulf %117, %120 : vector<10x256xf32>
    %122 = arith.addf %119, %121 : vector<10x256xf32>
    %c1_40 = arith.constant 1 : index
    %c0_41 = arith.constant 0 : index
    %c0_42 = arith.constant 0 : index
    %123 = vector.load %arg11[%c1_40, %c0_41, %c0_42] : memref<2x10x256xf32, #tpu.memory_space<vmem>>, vector<1x10x256xf32>
    %124 = vector.shape_cast %123 : vector<1x10x256xf32> to vector<10x256xf32>
    %125 = vector.shape_cast %122 : vector<10x256xf32> to vector<1x10x256xf32>
    tpu.vector_store %arg11[%c1_40, %c0_41, %c0_42], %125 {strides = array<i32>} : memref<2x10x256xf32, #tpu.memory_space<vmem>>, vector<1x10x256xf32>,
    %c0_43 = arith.constant 0 : index
    %c0_44 = arith.constant 0 : index
    %c0_45 = arith.constant 0 : index
    %126 = vector.load %arg11[%c0_43, %c0_44, %c0_45] : memref<2x10x256xf32, #tpu.memory_space<vmem>>, vector<2x10x256xf32>
    %cst_46 = arith.constant dense<0.000000e+00> : vector<2x10xf32>
    %127 = vector.multi_reduction <add>, %126, %cst_46 [2] : vector<2x10x256xf32> to vector<2x10xf32>
    %cst_47 = arith.constant 3.906250e-03 : f32
    %128 = vector.broadcast %cst_47 : f32 to vector<2x10xf32>
    %129 = arith.mulf %127, %128 : vector<2x10xf32>
    %c0_48 = arith.constant 0 : index
    %c0_49 = arith.constant 0 : index
    %130 = vector.load %arg10[%c0_48, %c0_49] : memref<2x10xf32, #tpu.memory_space<vmem>>, vector<2x10xf32>
    tpu.vector_store %arg10[%c0_48, %c0_49], %129 {strides = array<i32>} : memref<2x10xf32, #tpu.memory_space<vmem>>, vector<2x10xf32>,
    return
  }
}

</mosaic_0001>

<llo_original>
// kernel: tpu_custom_call.1
$region0: #{tpu_custom_call.1}
  #allocation0 [shape = 'u32[]', space=smem, size = 0x4, offset = 0x4, fixed_abs, tag = 'smem constant byte address 0x4 - core index']
  #allocation1 [shape = 'u32[144,128]{1,0:T(1,128)}', space=vmem, size = 0x12000, scoped, tag = 'internal scratch']
  %s0 = inlined_call_operand.vmem [shape: f32[2,3,256], index: 0, kind: input, shape index: {}]
  %s1 = inlined_call_operand.vmem [shape: f32[2,2,256], index: 1, kind: input, shape index: {}]
  %s2 = inlined_call_operand.vmem [shape: f32[32,3], index: 2, kind: input, shape index: {}]
  %s3 = inlined_call_operand.vmem [shape: f32[32,1], index: 3, kind: input, shape index: {}]
  %s4 = inlined_call_operand.vmem [shape: f32[10,32], index: 4, kind: input, shape index: {}]
  %s5 = inlined_call_operand.vmem [shape: f32[10,1], index: 5, kind: input, shape index: {}]
  %s6 = inlined_call_operand.vmem [shape: f32[32,2], index: 6, kind: input, shape index: {}]
  %s7 = inlined_call_operand.vmem [shape: f32[32,1], index: 7, kind: input, shape index: {}]
  %s8 = inlined_call_operand.vmem [shape: f32[10,32], index: 8, kind: input, shape index: {}]
  %s9 = inlined_call_operand.vmem [shape: f32[10,1], index: 9, kind: input, shape index: {}]
  %s10 = inlined_call_operand.hbm [shape: f32[2,10], index: 10, kind: output, shape index: {0}]
  %s11 = inlined_call_operand.vmem [shape: f32[2,10,256], index: 11, kind: output, shape index: {1}]
  %12 = xla_tuple %s10, %s11
  %s13 = sld [smem:[#allocation0]]
  $region58: #{tpu_custom_call.1} parent=0
    _
  %s15 = ssub.s32 1, %s13
  %s16 = scalar_select 0, %s15, %s13
  $region1: #{tpu_custom_call.1} parent=0
    #allocation2 [shape = 'u8[1024]{0}', space=vmem, size = 0x400, scoped, tag = 'output window, operand 0, single buffered']
    #allocation3 [shape = 's32[1]{0}', space=sflag, size = 0x4, scoped, tag = 'scoped memory for tpu_custom_call.1']
    %17 = vsyncpa [#allocation3], 0
    // Predicated region
    $region2: #{tpu_custom_call.1} parent=1 // pred_check
      _
    $region3: #{tpu_custom_call.1} parent=1 // pred_check_branch
      %19 = sbr.rel (0) target = $region5
    $region4: #{tpu_custom_call.1} parent=1 // pred_region
      _
    $region5: #{tpu_custom_call.1} parent=1 // pred_fallthru
      _
    // Predicated region
    $region6: #{tpu_custom_call.1} parent=1 // pred_check
      _
    $region7: #{tpu_custom_call.1} parent=1 // pred_check_branch
      %21 = sbr.rel (0) target = $region9
    $region8: #{tpu_custom_call.1} parent=1 // pred_region
      _
    $region9: #{tpu_custom_call.1} parent=1 // pred_fallthru
      _
    // Predicated region
    $region10: #{tpu_custom_call.1} parent=1 // pred_check
      _
    $region11: #{tpu_custom_call.1} parent=1 // pred_check_branch
      %23 = sbr.rel (0) target = $region13
    $region12: #{tpu_custom_call.1} parent=1 // pred_region
      _
    $region13: #{tpu_custom_call.1} parent=1 // pred_fallthru
      _
    // Predicated region
    $region14: #{tpu_custom_call.1} parent=1 // pred_check
      _
    $region15: #{tpu_custom_call.1} parent=1 // pred_check_branch
      %25 = sbr.rel (0) target = $region17
    $region16: #{tpu_custom_call.1} parent=1 // pred_region
      _
    $region17: #{tpu_custom_call.1} parent=1 // pred_fallthru
      _
    // Predicated region
    $region18: #{tpu_custom_call.1} parent=1 // pred_check
      _
    $region19: #{tpu_custom_call.1} parent=1 // pred_check_branch
      %27 = sbr.rel (0) target = $region21
    $region20: #{tpu_custom_call.1} parent=1 // pred_region
      _
    $region21: #{tpu_custom_call.1} parent=1 // pred_fallthru
      _
    // Predicated region
    $region22: #{tpu_custom_call.1} parent=1 // pred_check
      _
    $region23: #{tpu_custom_call.1} parent=1 // pred_check_branch
      %29 = sbr.rel (0) target = $region25
    $region24: #{tpu_custom_call.1} parent=1 // pred_region
      _
    $region25: #{tpu_custom_call.1} parent=1 // pred_fallthru
      _
    // Predicated region
    $region26: #{tpu_custom_call.1} parent=1 // pred_check
      _
    $region27: #{tpu_custom_call.1} parent=1 // pred_check_branch
      %31 = sbr.rel (0) target = $region29
    $region28: #{tpu_custom_call.1} parent=1 // pred_region
      _
    $region29: #{tpu_custom_call.1} parent=1 // pred_fallthru
      _
    // Predicated region
    $region30: #{tpu_custom_call.1} parent=1 // pred_check
      _
    $region31: #{tpu_custom_call.1} parent=1 // pred_check_branch
      %33 = sbr.rel (0) target = $region33
    $region32: #{tpu_custom_call.1} parent=1 // pred_region
      _
    $region33: #{tpu_custom_call.1} parent=1 // pred_fallthru
      _
    // Predicated region
    $region34: #{tpu_custom_call.1} parent=1 // pred_check
      _
    $region35: #{tpu_custom_call.1} parent=1 // pred_check_branch
      %35 = sbr.rel (0) target = $region37
    $region36: #{tpu_custom_call.1} parent=1 // pred_region
      _
    $region37: #{tpu_custom_call.1} parent=1 // pred_fallthru
      _
    // Predicated region
    $region38: #{tpu_custom_call.1} parent=1 // pred_check
      _
    $region39: #{tpu_custom_call.1} parent=1 // pred_check_branch
      %37 = sbr.rel (0) target = $region41
    $region40: #{tpu_custom_call.1} parent=1 // pred_region
      _
    $region41: #{tpu_custom_call.1} parent=1 // pred_fallthru
      _
    %v39 = vld [vmem:[%s2] sm:$0xff]
    %v40 = vld [vmem:[%s2 + $0x8] sm:$0xff]
    %v41 = vld [vmem:[%s2 + $0x10] sm:$0xff]
    %v42 = vld [vmem:[%s2 + $0x18] sm:$0xff]
    %v43 = vld [vmem:[%s3] sm:$0xff]
    %v44 = vld [vmem:[%s3 + $0x8] sm:$0xff]
    %v45 = vld [vmem:[%s3 + $0x10] sm:$0xff]
    %v46 = vld [vmem:[%s3 + $0x18] sm:$0xff]
    %v47 = vld [vmem:[%s4] sm:$0xff]
    %v48 = vld [vmem:[%s4 + $0x8] sm:$0x3]
    %v49 = vpack.c.bf16 %v48, %v47
    %v50 = vld [vmem:[%s5] sm:$0xff]
    %v51 = vld [vmem:[%s5 + $0x8] sm:$0x3]
    %v52 = vld [vmem:[%s6] sm:$0xff]
    %v53 = vld [vmem:[%s6 + $0x8] sm:$0xff]
    %v54 = vld [vmem:[%s6 + $0x10] sm:$0xff]
    %v55 = vld [vmem:[%s6 + $0x18] sm:$0xff]
    %v56 = vld [vmem:[%s7] sm:$0xff]
    %v57 = vld [vmem:[%s7 + $0x8] sm:$0xff]
    %v58 = vld [vmem:[%s7 + $0x10] sm:$0xff]
    %v59 = vld [vmem:[%s7 + $0x18] sm:$0xff]
    %v60 = vld [vmem:[%s8] sm:$0xff]
    %v61 = vld [vmem:[%s8 + $0x8] sm:$0x3]
    %v62 = vpack.c.bf16 %v61, %v60
    %v63 = vld [vmem:[%s9] sm:$0xff]
    %v64 = vld [vmem:[%s9 + $0x8] sm:$0x3]
    %v65 = vld [vmem:[%s0] sm:$0x77]
    %v66 = vld [vmem:[%s1] sm:$0xf]
    %68 = vset.pattern.permute.xlu0 0
    %69 = vperm.xlu0 %68, %v43
    %v70 = vpop.permute.xlu0 %69
    %73 = vset.pattern.permute.xlu0 0
    %74 = vperm.xlu0 %73, %v44
    %v75 = vpop.permute.xlu0 %74
    %78 = vset.pattern.permute.xlu0 0
    %79 = vperm.xlu0 %78, %v45
    %v80 = vpop.permute.xlu0 %79
    %83 = vset.pattern.permute.xlu0 0
    %84 = vperm.xlu0 %83, %v46
    %v85 = vpop.permute.xlu0 %84
    %88 = vset.pattern.permute.xlu0 0
    %89 = vperm.xlu0 %88, %v39
    %v90 = vpop.permute.xlu0 %89
    %93 = vset.pattern.permute.xlu0 0
    %94 = vperm.xlu0 %93, %v40
    %v95 = vpop.permute.xlu0 %94
    %98 = vset.pattern.permute.xlu0 0
    %99 = vperm.xlu0 %98, %v41
    %v100 = vpop.permute.xlu0 %99
    %103 = vset.pattern.permute.xlu0 0
    %104 = vperm.xlu0 %103, %v42
    %v105 = vpop.permute.xlu0 %104
    %v108 = vlaneseq
    %v109 = vshrl.u32 %v108, 7
    %v110 = vsub.s32 0, %v109
    %v111 = vrot.slane %v65, %v110
    %v112 = vlaneseq
    %v113 = vshrl.u32 %v112, 7
    %v114 = vsub.s32 4, %v113
    %v115 = vrot.slane %v65, %v114
    %v118 = vlaneseq
    %v119 = vshrl.u32 %v118, 7
    %v120 = vsub.s32 0, %v119
    %v121 = vrot.slane %v111, %v120
    %v122 = vlaneseq
    %v123 = vshrl.u32 %v122, 7
    %v124 = vsub.s32 0, %v123
    %v125 = vrot.slane %v115, %v124
    %v126 = vmul.f32 %v90, %v121
    %v127 = vmul.f32 %v90, %v125
    %v128 = vmul.f32 %v95, %v121
    %v129 = vmul.f32 %v95, %v125
    %v130 = vmul.f32 %v100, %v121
    %v131 = vmul.f32 %v100, %v125
    %v132 = vmul.f32 %v105, %v121
    %v133 = vmul.f32 %v105, %v125
    %v134 = vadd.f32 %v70, %v126
    %v135 = vadd.f32 %v70, %v127
    %v136 = vadd.f32 %v75, %v128
    %v137 = vadd.f32 %v75, %v129
    %v138 = vadd.f32 %v80, %v130
    %v139 = vadd.f32 %v80, %v131
    %v140 = vadd.f32 %v85, %v132
    %v141 = vadd.f32 %v85, %v133
    %142 = vset.pattern.permute.xlu0 1
    %143 = vperm.xlu0 %142, %v39
    %v144 = vpop.permute.xlu0 %143
    %146 = vset.pattern.permute.xlu0 1
    %147 = vperm.xlu0 %146, %v40
    %v148 = vpop.permute.xlu0 %147
    %150 = vset.pattern.permute.xlu0 1
    %151 = vperm.xlu0 %150, %v41
    %v152 = vpop.permute.xlu0 %151
    %154 = vset.pattern.permute.xlu0 1
    %155 = vperm.xlu0 %154, %v42
    %v156 = vpop.permute.xlu0 %155
    %v158 = vlaneseq
    %v159 = vshrl.u32 %v158, 7
    %v160 = vsub.s32 1, %v159
    %v161 = vrot.slane %v65, %v160
    %v162 = vlaneseq
    %v163 = vshrl.u32 %v162, 7
    %v164 = vsub.s32 5, %v163
    %v165 = vrot.slane %v65, %v164
    %v168 = vlaneseq
    %v169 = vshrl.u32 %v168, 7
    %v170 = vsub.s32 1, %v169
    %v171 = vrot.slane %v161, %v170
    %v172 = vlaneseq
    %v173 = vshrl.u32 %v172, 7
    %v174 = vsub.s32 1, %v173
    %v175 = vrot.slane %v165, %v174
    %v176 = vmul.f32 %v144, %v171
    %v177 = vmul.f32 %v144, %v175
    %v178 = vmul.f32 %v148, %v171
    %v179 = vmul.f32 %v148, %v175
    %v180 = vmul.f32 %v152, %v171
    %v181 = vmul.f32 %v152, %v175
    %v182 = vmul.f32 %v156, %v171
    %v183 = vmul.f32 %v156, %v175
    %v184 = vadd.f32 %v134, %v176
    %v185 = vadd.f32 %v135, %v177
    %v186 = vadd.f32 %v136, %v178
    %v187 = vadd.f32 %v137, %v179
    %v188 = vadd.f32 %v138, %v180
    %v189 = vadd.f32 %v139, %v181
    %v190 = vadd.f32 %v140, %v182
    %v191 = vadd.f32 %v141, %v183
    %192 = vset.pattern.permute.xlu0 2
    %193 = vperm.xlu0 %192, %v39
    %v194 = vpop.permute.xlu0 %193
    %196 = vset.pattern.permute.xlu0 2
    %197 = vperm.xlu0 %196, %v40
    %v198 = vpop.permute.xlu0 %197
    %200 = vset.pattern.permute.xlu0 2
    %201 = vperm.xlu0 %200, %v41
    %v202 = vpop.permute.xlu0 %201
    %204 = vset.pattern.permute.xlu0 2
    %205 = vperm.xlu0 %204, %v42
    %v206 = vpop.permute.xlu0 %205
    %v208 = vlaneseq
    %v209 = vshrl.u32 %v208, 7
    %v210 = vsub.s32 2, %v209
    %v211 = vrot.slane %v65, %v210
    %v212 = vlaneseq
    %v213 = vshrl.u32 %v212, 7
    %v214 = vsub.s32 6, %v213
    %v215 = vrot.slane %v65, %v214
    %v218 = vlaneseq
    %v219 = vshrl.u32 %v218, 7
    %v220 = vsub.s32 2, %v219
    %v221 = vrot.slane %v211, %v220
    %v222 = vlaneseq
    %v223 = vshrl.u32 %v222, 7
    %v224 = vsub.s32 2, %v223
    %v225 = vrot.slane %v215, %v224
    %v226 = vmul.f32 %v194, %v221
    %v227 = vmul.f32 %v194, %v225
    %v228 = vmul.f32 %v198, %v221
    %v229 = vmul.f32 %v198, %v225
    %v230 = vmul.f32 %v202, %v221
    %v231 = vmul.f32 %v202, %v225
    %v232 = vmul.f32 %v206, %v221
    %v233 = vmul.f32 %v206, %v225
    %v234 = vadd.f32 %v184, %v226
    %v235 = vadd.f32 %v185, %v227
    %v236 = vadd.f32 %v186, %v228
    %v237 = vadd.f32 %v187, %v229
    %v238 = vadd.f32 %v188, %v230
    %v239 = vadd.f32 %v189, %v231
    %v240 = vadd.f32 %v190, %v232
    %v241 = vadd.f32 %v191, %v233
    %v242 = vmax.f32 %v234, 0.0
    %v243 = vmax.f32 %v235, 0.0
    %v244 = vmax.f32 %v236, 0.0
    %v245 = vmax.f32 %v237, 0.0
    %v246 = vmax.f32 %v238, 0.0
    %v247 = vmax.f32 %v239, 0.0
    %v248 = vmax.f32 %v240, 0.0
    %v249 = vmax.f32 %v241, 0.0
    %v250 = vpack.c.bf16 %v244, %v242
    %v251 = vpack.c.bf16 %v245, %v243
    %v252 = vpack.c.bf16 %v248, %v246
    %v253 = vpack.c.bf16 %v249, %v247
    %255 = vset.pattern.permute.xlu0 0
    %256 = vperm.xlu0 %255, %v50
    %v257 = vpop.permute.xlu0 %256
    %260 = vset.pattern.permute.xlu0 0
    %261 = vperm.xlu0 %260, %v51
    %v262 = vpop.permute.xlu0 %261
    %vm264 = vcmask 261120
    %v266 = vsel %vm264, %v49, 0
    %268 = vmatprep.subr.bf16.mxu0 0
    %269 = vmatpush1.bf16.msra.mxu0 0
    %270 = vmatprep.subr.bf16.mxu0 0
    %271 = vmatpush1.bf16.msra.mxu0 0
    %272 = vmatprep.subr.bf16.mxu0 0
    %273 = vmatpush1.bf16.msra.mxu0 0
    %274 = vmatprep.subr.bf16.mxu0 0
    %275 = vmatpush1.bf16.msra.mxu0 0
    %276 = vmatprep.subr.bf16.mxu0 0
    %277 = vmatpush1.bf16.msra.mxu0 0
    %278 = vmatprep.subr.bf16.mxu0 0
    %279 = vmatpush1.bf16.msra.mxu0 0
    %280 = vmatprep.subr.bf16.mxu0 %v253
    %281 = vmatpush1.bf16.msra.mxu0 %v252
    %282 = vmatprep.subr.bf16.mxu0 %v251
    %283 = vmatpush1.bf16.msra.mxu0 %v250
    %284 = vmatprep.subr.bf16.mxu0 0
    %285 = vmatpush2.bf16.msra.mxu0 0
    %286 = vmatprep.subr.bf16.mxu0 0
    %287 = vmatpush2.bf16.msra.mxu0 0
    %288 = vmatprep.subr.bf16.mxu0 0
    %289 = vmatpush2.bf16.msra.mxu0 0
    %290 = vmatprep.subr.bf16.mxu0 0
    %291 = vmatpush2.bf16.msra.mxu0 0
    %292 = vmatprep.subr.bf16.mxu0 0
    %293 = vmatpush2.bf16.msra.mxu0 0
    %294 = vmatprep.subr.bf16.mxu0 0
    %295 = vmatpush2.bf16.msra.mxu0 0
    %296 = vmatprep.subr.bf16.mxu0 0
    %297 = vmatpush2.bf16.msra.mxu0 0
    %298 = vmatprep.subr.bf16.mxu0 0
    %299 = vmatpush2.bf16.msra.mxu0 0
    %300 = vmatprep.mubr.bf16.mxu0 0
    %301 = vmatmul.mubr.bf16.gmra.mxu0 %v266
    %v302 = vpop.f32.mrf.mxu0
    %v303 = vadd.f32 %v257, %v302
    %v304 = vpop.f32.mrf.mxu0
    %v305 = vadd.f32 %v257, %v304
    %v306 = vpop.f32.mrf.mxu0
    %v307 = vadd.f32 %v262, %v306
    %v308 = vpop.f32.mrf.mxu0
    %v309 = vadd.f32 %v262, %v308
    %310 = vdwg.mxu0
    %312 = vset.pattern.permute.xlu0 0
    %313 = vperm.xlu0 %312, %v56
    %v314 = vpop.permute.xlu0 %313
    %317 = vset.pattern.permute.xlu0 0
    %318 = vperm.xlu0 %317, %v57
    %v319 = vpop.permute.xlu0 %318
    %322 = vset.pattern.permute.xlu0 0
    %323 = vperm.xlu0 %322, %v58
    %v324 = vpop.permute.xlu0 %323
    %327 = vset.pattern.permute.xlu0 0
    %328 = vperm.xlu0 %327, %v59
    %v329 = vpop.permute.xlu0 %328
    %332 = vset.pattern.permute.xlu0 0
    %333 = vperm.xlu0 %332, %v52
    %v334 = vpop.permute.xlu0 %333
    %337 = vset.pattern.permute.xlu0 0
    %338 = vperm.xlu0 %337, %v53
    %v339 = vpop.permute.xlu0 %338
    %342 = vset.pattern.permute.xlu0 0
    %343 = vperm.xlu0 %342, %v54
    %v344 = vpop.permute.xlu0 %343
    %347 = vset.pattern.permute.xlu0 0
    %348 = vperm.xlu0 %347, %v55
    %v349 = vpop.permute.xlu0 %348
    %v352 = vlaneseq
    %v353 = vshrl.u32 %v352, 7
    %v354 = vsub.s32 0, %v353
    %v355 = vrot.slane %v66, %v354
    %v356 = vlaneseq
    %v357 = vshrl.u32 %v356, 7
    %v358 = vsub.s32 2, %v357
    %v359 = vrot.slane %v66, %v358
    %v362 = vlaneseq
    %v363 = vshrl.u32 %v362, 7
    %v364 = vsub.s32 0, %v363
    %v365 = vrot.slane %v355, %v364
    %v366 = vlaneseq
    %v367 = vshrl.u32 %v366, 7
    %v368 = vsub.s32 0, %v367
    %v369 = vrot.slane %v359, %v368
    %v370 = vmul.f32 %v334, %v365
    %v371 = vmul.f32 %v334, %v369
    %v372 = vmul.f32 %v339, %v365
    %v373 = vmul.f32 %v339, %v369
    %v374 = vmul.f32 %v344, %v365
    %v375 = vmul.f32 %v344, %v369
    %v376 = vmul.f32 %v349, %v365
    %v377 = vmul.f32 %v349, %v369
    %v378 = vadd.f32 %v314, %v370
    %v379 = vadd.f32 %v314, %v371
    %v380 = vadd.f32 %v319, %v372
    %v381 = vadd.f32 %v319, %v373
    %v382 = vadd.f32 %v324, %v374
    %v383 = vadd.f32 %v324, %v375
    %v384 = vadd.f32 %v329, %v376
    %v385 = vadd.f32 %v329, %v377
    %386 = vset.pattern.permute.xlu0 1
    %387 = vperm.xlu0 %386, %v52
    %v388 = vpop.permute.xlu0 %387
    %390 = vset.pattern.permute.xlu0 1
    %391 = vperm.xlu0 %390, %v53
    %v392 = vpop.permute.xlu0 %391
    %394 = vset.pattern.permute.xlu0 1
    %395 = vperm.xlu0 %394, %v54
    %v396 = vpop.permute.xlu0 %395
    %398 = vset.pattern.permute.xlu0 1
    %399 = vperm.xlu0 %398, %v55
    %v400 = vpop.permute.xlu0 %399
    %v402 = vlaneseq
    %v403 = vshrl.u32 %v402, 7
    %v404 = vsub.s32 1, %v403
    %v405 = vrot.slane %v66, %v404
    %v406 = vlaneseq
    %v407 = vshrl.u32 %v406, 7
    %v408 = vsub.s32 3, %v407
    %v409 = vrot.slane %v66, %v408
    %v412 = vlaneseq
    %v413 = vshrl.u32 %v412, 7
    %v414 = vsub.s32 1, %v413
    %v415 = vrot.slane %v405, %v414
    %v416 = vlaneseq
    %v417 = vshrl.u32 %v416, 7
    %v418 = vsub.s32 1, %v417
    %v419 = vrot.slane %v409, %v418
    %v420 = vmul.f32 %v388, %v415
    %v421 = vmul.f32 %v388, %v419
    %v422 = vmul.f32 %v392, %v415
    %v423 = vmul.f32 %v392, %v419
    %v424 = vmul.f32 %v396, %v415
    %v425 = vmul.f32 %v396, %v419
    %v426 = vmul.f32 %v400, %v415
    %v427 = vmul.f32 %v400, %v419
    %v428 = vadd.f32 %v378, %v420
    %v429 = vadd.f32 %v379, %v421
    %v430 = vadd.f32 %v380, %v422
    %v431 = vadd.f32 %v381, %v423
    %v432 = vadd.f32 %v382, %v424
    %v433 = vadd.f32 %v383, %v425
    %v434 = vadd.f32 %v384, %v426
    %v435 = vadd.f32 %v385, %v427
    %v436 = vmax.f32 %v428, 0.0
    %v437 = vmax.f32 %v429, 0.0
    %v438 = vmax.f32 %v430, 0.0
    %v439 = vmax.f32 %v431, 0.0
    %v440 = vmax.f32 %v432, 0.0
    %v441 = vmax.f32 %v433, 0.0
    %v442 = vmax.f32 %v434, 0.0
    %v443 = vmax.f32 %v435, 0.0
    %v444 = vpack.c.bf16 %v438, %v436
    %v445 = vpack.c.bf16 %v439, %v437
    %v446 = vpack.c.bf16 %v442, %v440
    %v447 = vpack.c.bf16 %v443, %v441
    %449 = vset.pattern.permute.xlu0 0
    %450 = vperm.xlu0 %449, %v63
    %v451 = vpop.permute.xlu0 %450
    %454 = vset.pattern.permute.xlu0 0
    %455 = vperm.xlu0 %454, %v64
    %v456 = vpop.permute.xlu0 %455
    %v459 = vsel %vm264, %v62, 0
    %461 = vmatprep.subr.bf16.mxu0 0
    %462 = vmatpush1.bf16.msra.mxu0 0
    %463 = vmatprep.subr.bf16.mxu0 0
    %464 = vmatpush1.bf16.msra.mxu0 0
    %465 = vmatprep.subr.bf16.mxu0 0
    %466 = vmatpush1.bf16.msra.mxu0 0
    %467 = vmatprep.subr.bf16.mxu0 0
    %468 = vmatpush1.bf16.msra.mxu0 0
    %469 = vmatprep.subr.bf16.mxu0 0
    %470 = vmatpush1.bf16.msra.mxu0 0
    %471 = vmatprep.subr.bf16.mxu0 0
    %472 = vmatpush1.bf16.msra.mxu0 0
    %473 = vmatprep.subr.bf16.mxu0 %v447
    %474 = vmatpush1.bf16.msra.mxu0 %v446
    %475 = vmatprep.subr.bf16.mxu0 %v445
    %476 = vmatpush1.bf16.msra.mxu0 %v444
    %477 = vmatprep.subr.bf16.mxu0 0
    %478 = vmatpush2.bf16.msra.mxu0 0
    %479 = vmatprep.subr.bf16.mxu0 0
    %480 = vmatpush2.bf16.msra.mxu0 0
    %481 = vmatprep.subr.bf16.mxu0 0
    %482 = vmatpush2.bf16.msra.mxu0 0
    %483 = vmatprep.subr.bf16.mxu0 0
    %484 = vmatpush2.bf16.msra.mxu0 0
    %485 = vmatprep.subr.bf16.mxu0 0
    %486 = vmatpush2.bf16.msra.mxu0 0
    %487 = vmatprep.subr.bf16.mxu0 0
    %488 = vmatpush2.bf16.msra.mxu0 0
    %489 = vmatprep.subr.bf16.mxu0 0
    %490 = vmatpush2.bf16.msra.mxu0 0
    %491 = vmatprep.subr.bf16.mxu0 0
    %492 = vmatpush2.bf16.msra.mxu0 0
    %493 = vmatprep.mubr.bf16.mxu0 0
    %494 = vmatmul.mubr.bf16.gmra.mxu0 %v459
    %v495 = vpop.f32.mrf.mxu0
    %v496 = vadd.f32 %v451, %v495
    %v497 = vpop.f32.mrf.mxu0
    %v498 = vadd.f32 %v451, %v497
    %v499 = vpop.f32.mrf.mxu0
    %v500 = vadd.f32 %v456, %v499
    %v501 = vpop.f32.mrf.mxu0
    %v502 = vadd.f32 %v456, %v501
    %503 = vdwg.mxu0
    %v504 = vmul.f32 %v303, 0.5
    %v505 = vmul.f32 %v305, 0.5
    %v506 = vmul.f32 %v307, 0.5
    %v507 = vmul.f32 %v309, 0.5
    %v508 = vmul.f32 %v496, 0.5
    %v509 = vmul.f32 %v498, 0.5
    %v510 = vmul.f32 %v500, 0.5
    %v511 = vmul.f32 %v502, 0.5
    %v512 = vadd.f32 %v504, %v508
    %v513 = vadd.f32 %v505, %v509
    %v514 = vadd.f32 %v506, %v510
    %v515 = vadd.f32 %v507, %v511
    %516 = vst [vmem:[%s11] sm:$0xff] %v512
    %517 = vst [vmem:[%s11 + $0x8] sm:$0xff] %v513
    %518 = vst [vmem:[%s11 + $0x10] sm:$0x3] %v514
    %519 = vst [vmem:[%s11 + $0x18] sm:$0x3] %v515
    %s520 = scalar_lea.vmem %s0, 8
    %v521 = vld [vmem:[%s520] sm:$0x77]
    %s522 = scalar_lea.vmem %s1, 4
    %v523 = vld [vmem:[%s522] sm:$0xf]
    %v525 = vlaneseq
    %v526 = vshrl.u32 %v525, 7
    %v527 = vsub.s32 0, %v526
    %v528 = vrot.slane %v521, %v527
    %v529 = vlaneseq
    %v530 = vshrl.u32 %v529, 7
    %v531 = vsub.s32 4, %v530
    %v532 = vrot.slane %v521, %v531
    %v535 = vlaneseq
    %v536 = vshrl.u32 %v535, 7
    %v537 = vsub.s32 0, %v536
    %v538 = vrot.slane %v528, %v537
    %v539 = vlaneseq
    %v540 = vshrl.u32 %v539, 7
    %v541 = vsub.s32 0, %v540
    %v542 = vrot.slane %v532, %v541
    %v543 = vmul.f32 %v90, %v538
    %v544 = vmul.f32 %v90, %v542
    %v545 = vmul.f32 %v95, %v538
    %v546 = vmul.f32 %v95, %v542
    %v547 = vmul.f32 %v100, %v538
    %v548 = vmul.f32 %v100, %v542
    %v549 = vmul.f32 %v105, %v538
    %v550 = vmul.f32 %v105, %v542
    %v551 = vadd.f32 %v70, %v543
    %v552 = vadd.f32 %v70, %v544
    %v553 = vadd.f32 %v75, %v545
    %v554 = vadd.f32 %v75, %v546
    %v555 = vadd.f32 %v80, %v547
    %v556 = vadd.f32 %v80, %v548
    %v557 = vadd.f32 %v85, %v549
    %v558 = vadd.f32 %v85, %v550
    %v559 = vlaneseq
    %v560 = vshrl.u32 %v559, 7
    %v561 = vsub.s32 1, %v560
    %v562 = vrot.slane %v521, %v561
    %v563 = vlaneseq
    %v564 = vshrl.u32 %v563, 7
    %v565 = vsub.s32 5, %v564
    %v566 = vrot.slane %v521, %v565
    %v569 = vlaneseq
    %v570 = vshrl.u32 %v569, 7
    %v571 = vsub.s32 1, %v570
    %v572 = vrot.slane %v562, %v571
    %v573 = vlaneseq
    %v574 = vshrl.u32 %v573, 7
    %v575 = vsub.s32 1, %v574
    %v576 = vrot.slane %v566, %v575
    %v577 = vmul.f32 %v144, %v572
    %v578 = vmul.f32 %v144, %v576
    %v579 = vmul.f32 %v148, %v572
    %v580 = vmul.f32 %v148, %v576
    %v581 = vmul.f32 %v152, %v572
    %v582 = vmul.f32 %v152, %v576
    %v583 = vmul.f32 %v156, %v572
    %v584 = vmul.f32 %v156, %v576
    %v585 = vadd.f32 %v551, %v577
    %v586 = vadd.f32 %v552, %v578
    %v587 = vadd.f32 %v553, %v579
    %v588 = vadd.f32 %v554, %v580
    %v589 = vadd.f32 %v555, %v581
    %v590 = vadd.f32 %v556, %v582
    %v591 = vadd.f32 %v557, %v583
    %v592 = vadd.f32 %v558, %v584
    %v593 = vlaneseq
    %v594 = vshrl.u32 %v593, 7
    %v595 = vsub.s32 2, %v594
    %v596 = vrot.slane %v521, %v595
    %v597 = vlaneseq
    %v598 = vshrl.u32 %v597, 7
    %v599 = vsub.s32 6, %v598
    %v600 = vrot.slane %v521, %v599
    %v603 = vlaneseq
    %v604 = vshrl.u32 %v603, 7
    %v605 = vsub.s32 2, %v604
    %v606 = vrot.slane %v596, %v605
    %v607 = vlaneseq
    %v608 = vshrl.u32 %v607, 7
    %v609 = vsub.s32 2, %v608
    %v610 = vrot.slane %v600, %v609
    %v611 = vmul.f32 %v194, %v606
    %v612 = vmul.f32 %v194, %v610
    %v613 = vmul.f32 %v198, %v606
    %v614 = vmul.f32 %v198, %v610
    %v615 = vmul.f32 %v202, %v606
    %v616 = vmul.f32 %v202, %v610
    %v617 = vmul.f32 %v206, %v606
    %v618 = vmul.f32 %v206, %v610
    %v619 = vadd.f32 %v585, %v611
    %v620 = vadd.f32 %v586, %v612
    %v621 = vadd.f32 %v587, %v613
    %v622 = vadd.f32 %v588, %v614
    %v623 = vadd.f32 %v589, %v615
    %v624 = vadd.f32 %v590, %v616
    %v625 = vadd.f32 %v591, %v617
    %v626 = vadd.f32 %v592, %v618
    %v627 = vmax.f32 %v619, 0.0
    %v628 = vmax.f32 %v620, 0.0
    %v629 = vmax.f32 %v621, 0.0
    %v630 = vmax.f32 %v622, 0.0
    %v631 = vmax.f32 %v623, 0.0
    %v632 = vmax.f32 %v624, 0.0
    %v633 = vmax.f32 %v625, 0.0
    %v634 = vmax.f32 %v626, 0.0
    %v635 = vpack.c.bf16 %v629, %v627
    %v636 = vpack.c.bf16 %v630, %v628
    %v637 = vpack.c.bf16 %v633, %v631
    %v638 = vpack.c.bf16 %v634, %v632
    %639 = vmatprep.subr.bf16.mxu0 0
    %640 = vmatpush1.bf16.msra.mxu0 0
    %641 = vmatprep.subr.bf16.mxu0 0
    %642 = vmatpush1.bf16.msra.mxu0 0
    %643 = vmatprep.subr.bf16.mxu0 0
    %644 = vmatpush1.bf16.msra.mxu0 0
    %645 = vmatprep.subr.bf16.mxu0 0
    %646 = vmatpush1.bf16.msra.mxu0 0
    %647 = vmatprep.subr.bf16.mxu0 0
    %648 = vmatpush1.bf16.msra.mxu0 0
    %649 = vmatprep.subr.bf16.mxu0 0
    %650 = vmatpush1.bf16.msra.mxu0 0
    %651 = vmatprep.subr.bf16.mxu0 %v638
    %652 = vmatpush1.bf16.msra.mxu0 %v637
    %653 = vmatprep.subr.bf16.mxu0 %v636
    %654 = vmatpush1.bf16.msra.mxu0 %v635
    %655 = vmatprep.subr.bf16.mxu0 0
    %656 = vmatpush2.bf16.msra.mxu0 0
    %657 = vmatprep.subr.bf16.mxu0 0
    %658 = vmatpush2.bf16.msra.mxu0 0
    %659 = vmatprep.subr.bf16.mxu0 0
    %660 = vmatpush2.bf16.msra.mxu0 0
    %661 = vmatprep.subr.bf16.mxu0 0
    %662 = vmatpush2.bf16.msra.mxu0 0
    %663 = vmatprep.subr.bf16.mxu0 0
    %664 = vmatpush2.bf16.msra.mxu0 0
    %665 = vmatprep.subr.bf16.mxu0 0
    %666 = vmatpush2.bf16.msra.mxu0 0
    %667 = vmatprep.subr.bf16.mxu0 0
    %668 = vmatpush2.bf16.msra.mxu0 0
    %669 = vmatprep.subr.bf16.mxu0 0
    %670 = vmatpush2.bf16.msra.mxu0 0
    %671 = vmatprep.mubr.bf16.mxu0 0
    %672 = vmatmul.mubr.bf16.gmra.mxu0 %v266
    %v673 = vpop.f32.mrf.mxu0
    %v674 = vadd.f32 %v257, %v673
    %v675 = vpop.f32.mrf.mxu0
    %v676 = vadd.f32 %v257, %v675
    %v677 = vpop.f32.mrf.mxu0
    %v678 = vadd.f32 %v262, %v677
    %v679 = vpop.f32.mrf.mxu0
    %v680 = vadd.f32 %v262, %v679
    %681 = vdwg.mxu0
    %v683 = vlaneseq
    %v684 = vshrl.u32 %v683, 7
    %v685 = vsub.s32 0, %v684
    %v686 = vrot.slane %v523, %v685
    %v687 = vlaneseq
    %v688 = vshrl.u32 %v687, 7
    %v689 = vsub.s32 2, %v688
    %v690 = vrot.slane %v523, %v689
    %v693 = vlaneseq
    %v694 = vshrl.u32 %v693, 7
    %v695 = vsub.s32 0, %v694
    %v696 = vrot.slane %v686, %v695
    %v697 = vlaneseq
    %v698 = vshrl.u32 %v697, 7
    %v699 = vsub.s32 0, %v698
    %v700 = vrot.slane %v690, %v699
    %v701 = vmul.f32 %v334, %v696
    %v702 = vmul.f32 %v334, %v700
    %v703 = vmul.f32 %v339, %v696
    %v704 = vmul.f32 %v339, %v700
    %v705 = vmul.f32 %v344, %v696
    %v706 = vmul.f32 %v344, %v700
    %v707 = vmul.f32 %v349, %v696
    %v708 = vmul.f32 %v349, %v700
    %v709 = vadd.f32 %v314, %v701
    %v710 = vadd.f32 %v314, %v702
    %v711 = vadd.f32 %v319, %v703
    %v712 = vadd.f32 %v319, %v704
    %v713 = vadd.f32 %v324, %v705
    %v714 = vadd.f32 %v324, %v706
    %v715 = vadd.f32 %v329, %v707
    %v716 = vadd.f32 %v329, %v708
    %v717 = vlaneseq
    %v718 = vshrl.u32 %v717, 7
    %v719 = vsub.s32 1, %v718
    %v720 = vrot.slane %v523, %v719
    %v721 = vlaneseq
    %v722 = vshrl.u32 %v721, 7
    %v723 = vsub.s32 3, %v722
    %v724 = vrot.slane %v523, %v723
    %v727 = vlaneseq
    %v728 = vshrl.u32 %v727, 7
    %v729 = vsub.s32 1, %v728
    %v730 = vrot.slane %v720, %v729
    %v731 = vlaneseq
    %v732 = vshrl.u32 %v731, 7
    %v733 = vsub.s32 1, %v732
    %v734 = vrot.slane %v724, %v733
    %v735 = vmul.f32 %v388, %v730
    %v736 = vmul.f32 %v388, %v734
    %v737 = vmul.f32 %v392, %v730
    %v738 = vmul.f32 %v392, %v734
    %v739 = vmul.f32 %v396, %v730
    %v740 = vmul.f32 %v396, %v734
    %v741 = vmul.f32 %v400, %v730
    %v742 = vmul.f32 %v400, %v734
    %v743 = vadd.f32 %v709, %v735
    %v744 = vadd.f32 %v710, %v736
    %v745 = vadd.f32 %v711, %v737
    %v746 = vadd.f32 %v712, %v738
    %v747 = vadd.f32 %v713, %v739
    %v748 = vadd.f32 %v714, %v740
    %v749 = vadd.f32 %v715, %v741
    %v750 = vadd.f32 %v716, %v742
    %v751 = vmax.f32 %v743, 0.0
    %v752 = vmax.f32 %v744, 0.0
    %v753 = vmax.f32 %v745, 0.0
    %v754 = vmax.f32 %v746, 0.0
    %v755 = vmax.f32 %v747, 0.0
    %v756 = vmax.f32 %v748, 0.0
    %v757 = vmax.f32 %v749, 0.0
    %v758 = vmax.f32 %v750, 0.0
    %v759 = vpack.c.bf16 %v753, %v751
    %v760 = vpack.c.bf16 %v754, %v752
    %v761 = vpack.c.bf16 %v757, %v755
    %v762 = vpack.c.bf16 %v758, %v756
    %763 = vmatprep.subr.bf16.mxu0 0
    %764 = vmatpush1.bf16.msra.mxu0 0
    %765 = vmatprep.subr.bf16.mxu0 0
    %766 = vmatpush1.bf16.msra.mxu0 0
    %767 = vmatprep.subr.bf16.mxu0 0
    %768 = vmatpush1.bf16.msra.mxu0 0
    %769 = vmatprep.subr.bf16.mxu0 0
    %770 = vmatpush1.bf16.msra.mxu0 0
    %771 = vmatprep.subr.bf16.mxu0 0
    %772 = vmatpush1.bf16.msra.mxu0 0
    %773 = vmatprep.subr.bf16.mxu0 0
    %774 = vmatpush1.bf16.msra.mxu0 0
    %775 = vmatprep.subr.bf16.mxu0 %v762
    %776 = vmatpush1.bf16.msra.mxu0 %v761
    %777 = vmatprep.subr.bf16.mxu0 %v760
    %778 = vmatpush1.bf16.msra.mxu0 %v759
    %779 = vmatprep.subr.bf16.mxu0 0
    %780 = vmatpush2.bf16.msra.mxu0 0
    %781 = vmatprep.subr.bf16.mxu0 0
    %782 = vmatpush2.bf16.msra.mxu0 0
    %783 = vmatprep.subr.bf16.mxu0 0
    %784 = vmatpush2.bf16.msra.mxu0 0
    %785 = vmatprep.subr.bf16.mxu0 0
    %786 = vmatpush2.bf16.msra.mxu0 0
    %787 = vmatprep.subr.bf16.mxu0 0
    %788 = vmatpush2.bf16.msra.mxu0 0
    %789 = vmatprep.subr.bf16.mxu0 0
    %790 = vmatpush2.bf16.msra.mxu0 0
    %791 = vmatprep.subr.bf16.mxu0 0
    %792 = vmatpush2.bf16.msra.mxu0 0
    %793 = vmatprep.subr.bf16.mxu0 0
    %794 = vmatpush2.bf16.msra.mxu0 0
    %795 = vmatprep.mubr.bf16.mxu0 0
    %796 = vmatmul.mubr.bf16.gmra.mxu0 %v459
    %v797 = vpop.f32.mrf.mxu0
    %v798 = vadd.f32 %v451, %v797
    %v799 = vpop.f32.mrf.mxu0
    %v800 = vadd.f32 %v451, %v799
    %v801 = vpop.f32.mrf.mxu0
    %v802 = vadd.f32 %v456, %v801
    %v803 = vpop.f32.mrf.mxu0
    %v804 = vadd.f32 %v456, %v803
    %805 = vdwg.mxu0
    %v806 = vmul.f32 %v674, 0.5
    %v807 = vmul.f32 %v676, 0.5
    %v808 = vmul.f32 %v678, 0.5
    %v809 = vmul.f32 %v680, 0.5
    %v810 = vmul.f32 %v798, 0.5
    %v811 = vmul.f32 %v800, 0.5
    %v812 = vmul.f32 %v802, 0.5
    %v813 = vmul.f32 %v804, 0.5
    %v814 = vadd.f32 %v806, %v810
    %v815 = vadd.f32 %v807, %v811
    %v816 = vadd.f32 %v808, %v812
    %v817 = vadd.f32 %v809, %v813
    %s818 = scalar_lea.vmem %s11, 32
    %819 = vst [vmem:[%s818] sm:$0xff] %v814
    %820 = vst [vmem:[%s818 + $0x8] sm:$0xff] %v815
    %821 = vst [vmem:[%s818 + $0x10] sm:$0x3] %v816
    %822 = vst [vmem:[%s818 + $0x18] sm:$0x3] %v817
    %v823 = vld [vmem:[%s11] sm:$0xff]
    %v824 = vld [vmem:[%s11 + $0x8] sm:$0xff]
    %v825 = vld [vmem:[%s11 + $0x10] sm:$0x3]
    %v826 = vld [vmem:[%s11 + $0x18] sm:$0x3]
    %v827 = vld [vmem:[%s11 + $0x20] sm:$0xff]
    %v828 = vld [vmem:[%s11 + $0x28] sm:$0xff]
    %v829 = vld [vmem:[%s11 + $0x30] sm:$0x3]
    %v830 = vld [vmem:[%s11 + $0x38] sm:$0x3]
    %v831 = vadd.f32 %v823, %v824
    %832 = vadd.xlane.f32.xlu0 %v831
    %v833 = vpop.xlane.xlu0 %832
    %vm834 = vcmask 1041408
    %v835 = vsel %vm834, %v825, 0.0
    %v836 = vsel %vm834, %v826, 0.0
    %v837 = vadd.f32 %v835, %v836
    %838 = vadd.xlane.f32.xlu0 %v837
    %v839 = vpop.xlane.xlu0 %838
    %v840 = vadd.f32 %v827, %v828
    %841 = vadd.xlane.f32.xlu0 %v840
    %v842 = vpop.xlane.xlu0 %841
    %v843 = vsel %vm834, %v829, 0.0
    %v844 = vsel %vm834, %v830, 0.0
    %v845 = vadd.f32 %v843, %v844
    %846 = vadd.xlane.f32.xlu0 %v845
    %v847 = vpop.xlane.xlu0 %846
    %v848 = vmul.f32 %v833, 0.00390625
    %v849 = vmul.f32 %v839, 0.00390625
    %v850 = vmul.f32 %v842, 0.00390625
    %v851 = vmul.f32 %v847, 0.00390625
    %v856 = vlaneseq
    %v857 = vand.u32 %v856, 127
    %v858 = vlaneseq
    %v859 = vshrl.u32 %v858, 7
    %v860 = vsub.s32 %v857, %v859
    %v861 = vrot.slane %v848, %v860
    %v862 = vadd.s32 %v857, 4294967288
    %v863 = vlaneseq
    %v864 = vshrl.u32 %v863, 7
    %v865 = vsub.s32 %v862, %v864
    %v866 = vrot.slane %v849, %v865
    %vm867 = vcmask 130112
    %v868 = vsel %vm867, %v866, %v861
    %v869 = vlaneseq
    %v870 = vshrl.u32 %v869, 7
    %v871 = vsub.s32 %v857, %v870
    %v872 = vrot.slane %v850, %v871
    %v873 = vlaneseq
    %v874 = vshrl.u32 %v873, 7
    %v875 = vsub.s32 %v862, %v874
    %v876 = vrot.slane %v851, %v875
    %v877 = vsel %vm867, %v876, %v872
    %vm878 = vcmask 1041409
    %v879 = vsel %vm878, %v877, %v868
    %vm881 = vcmask 74752
    %882 = vst.msk [vmem:[#allocation2] sm:$0x3] %vm881, %v879
    // Predicated region
    $region42: #{tpu_custom_call.1} parent=1 // pred_check
      _
    $region43: #{tpu_custom_call.1} parent=1 // pred_check_branch
      %884 = sbr.rel (0) target = $region45
    $region44: #{tpu_custom_call.1} parent=1 // pred_region
      %s886 = ssub.s32 32, 32
      %887 = vsyncadd [#allocation3], %s886
      %s889 = sshll.u32 [#allocation2], 4
      %s890 = int_to_ptr.vmem [resolvable:$true] %s889
      %892 = dma.vmem_to_hbm [thread:$0]  %s890, 32, %s10, [#allocation3]
    $region45: #{tpu_custom_call.1} parent=1 // pred_fallthru
      _
    // Predicated region
    $region46: #{tpu_custom_call.1} parent=1 // pred_check
      _
    $region47: #{tpu_custom_call.1} parent=1 // pred_check_branch
      %894 = sbr.rel (0) target = $region49
    $region48: #{tpu_custom_call.1} parent=1 // pred_region
      _
    $region49: #{tpu_custom_call.1} parent=1 // pred_fallthru
      _
    // Predicated region
    $region50: #{tpu_custom_call.1} parent=1 // pred_check
      _
    $region51: #{tpu_custom_call.1} parent=1 // pred_check_branch
      %896 = sbr.rel (0) target = $region53
    $region52: #{tpu_custom_call.1} parent=1 // pred_region
      %897 = dma.done [#allocation3], 32
    $region53: #{tpu_custom_call.1} parent=1 // pred_fallthru
      _
    // Predicated region
    $region54: #{tpu_custom_call.1} parent=1 // pred_check
      _
    $region55: #{tpu_custom_call.1} parent=1 // pred_check_branch
      %899 = sbr.rel (0) target = $region57
    $region56: #{tpu_custom_call.1} parent=1 // pred_region
      _
    $region57: #{tpu_custom_call.1} parent=1 // pred_fallthru
      _
    %900 = vsyncpa [#allocation3], 1

</llo_original>
